<compile_context>
chip_gen: v5e
topology: v5e:2x2
jax: 0.10.0
libtpu: 0.0.40
codegen_flags: <defaults>
</compile_context>

<pallas_src>
import jax
import jax.numpy as jnp
from jax.experimental import pallas as pl
from jax.experimental.pallas import tpu as pltpu

_LANES = 128


def _logistic_kernel(w_ref, b_ref, x_ref, o_ref):
    # w_ref: (3,) f32 in SMEM, b_ref: (1,) f32 in SMEM
    # x_ref: (3, TILE_B) f32 in VMEM  (features on sublanes, batch on lanes)
    # o_ref: (1, TILE_B) f32 in VMEM  (lane-dense output row)
    # Linear(3, 1) as three lane-wide FMAs on the VPU.
    z = (w_ref[0] * x_ref[0:1, :]
         + w_ref[1] * x_ref[1:2, :]
         + w_ref[2] * x_ref[2:3, :]
         + b_ref[0])
    # exp() issues on the otherwise-idle EUP slot; the f32 divide is free
    # filler for an HBM-bound kernel and keeps exact-sigmoid accuracy.
    o_ref[...] = (1.0 / (1.0 + jnp.exp(-z))).astype(o_ref.dtype)


def rain_prediction_forward_feature_major(x_t, weight, bias, *, tile_b=65536):
    """Core kernel path.  x_t: feature-major (3, B) f32 -> (1, B) sigmoid(Wx+b)."""
    feat, batch = x_t.shape
    assert feat == 3 and weight.shape == (1, feat) and bias.shape == (1,)

    # Pad batch only up to the 128-lane granule (not to a tile multiple);
    # ragged last grid blocks are clipped by Pallas.
    b_aligned = pl.cdiv(batch, _LANES) * _LANES
    if b_aligned != batch:
        x_t = jnp.pad(x_t, ((0, 0), (0, b_aligned - batch)))

    # Clamp the tile for tiny batches; enforce the (8,128) lane constraint.
    tile_b = min(tile_b, b_aligned)
    assert tile_b % _LANES == 0, f"tile_b={tile_b} must be a multiple of 128"
    num_blocks = pl.cdiv(b_aligned, tile_b)

    # Double-buffered VMEM footprint: input block pads 3->8 sublanes, output
    # pads 1->8, both f32 -> 128 B per lane total.
    vmem_needed = 128 * tile_b
    vmem_limit = min(48 * 1024 * 1024,                       # v7x-safe cap
                     max(32 * 1024 * 1024, vmem_needed + (4 << 20)))

    w_flat = weight.reshape(feat).astype(jnp.float32)        # 3 scalars -> SMEM
    b_flat = bias.reshape(1).astype(jnp.float32)             # 1 scalar  -> SMEM

    out = pl.pallas_call(
        _logistic_kernel,
        out_shape=jax.ShapeDtypeStruct((1, b_aligned), x_t.dtype),
        grid_spec=pltpu.PrefetchScalarGridSpec(
            num_scalar_prefetch=0,
            grid=(num_blocks,),
            in_specs=[
                pl.BlockSpec(memory_space=pltpu.MemorySpace.SMEM),   # weight (3,)
                pl.BlockSpec(memory_space=pltpu.MemorySpace.SMEM),   # bias   (1,)
                pl.BlockSpec((feat, tile_b), lambda i: (0, i)),      # x tile
            ],
            out_specs=pl.BlockSpec((1, tile_b), lambda i: (0, i)),
        ),
        compiler_params=pltpu.CompilerParams(
            dimension_semantics=("parallel",),   # shard batch blocks across TCs
            vmem_limit_bytes=vmem_limit,
        ),
        cost_estimate=pl.CostEstimate(
            flops=7 * b_aligned,            # 3 mul + 3 add + 1 add per element
            transcendentals=b_aligned,      # exp per element
            bytes_accessed=16 * b_aligned,  # 12 B in + 4 B out per element
        ),
    )(w_flat, b_flat, x_t)

    return out[:, :batch] if b_aligned != batch else out


def rain_prediction_forward(x, weight, bias, *, tile_b=65536):
    """Torch-equivalent forward: x (B, 3) f32, weight (1, 3), bias (1,) -> (B, 1)."""
    batch, feat = x.shape
    assert feat == 3
    # TODO(synk): the producer should emit feature-major (3, B) directly (use
    # rain_prediction_forward_feature_major) so this transpose pass — an extra
    # ~24 B/element HBM read+write before the kernel — disappears end-to-end.
    x_t = x.T
    out = rain_prediction_forward_feature_major(x_t, weight, bias, tile_b=tile_b)
    # Consumers that can accept (1, B) / (B,) should take `out` directly and
    # skip this reshape; kept here only for torch-shaped (B, 1) semantics.
    return out.reshape(batch, 1)


if __name__ == "__main__":
    key = jax.random.PRNGKey(0)
    kx, kw, kb = jax.random.split(key, 3)

    batch, in_features, out_features = 8, 3, 1

    # Deterministic parameter init (mimics nn.Linear's uniform(-1/sqrt(fan_in), ...))
    bound = 1.0 / jnp.sqrt(jnp.float32(in_features))
    weight = jax.random.uniform(kw, (out_features, in_features),
                                minval=-bound, maxval=bound, dtype=jnp.float32)
    bias = jax.random.uniform(kb, (out_features,),
                              minval=-bound, maxval=bound, dtype=jnp.float32)

    x = jax.random.normal(kx, (batch, in_features), dtype=jnp.float32)

    out = rain_prediction_forward(x, weight, bias)
    out = jax.block_until_ready(out)

    # Reference check against plain JAX
    ref = jax.nn.sigmoid(x @ weight.T + bias)
    assert out.shape == (batch, out_features)
    assert jnp.allclose(out, ref, atol=1e-5), "mismatch vs reference"

    print("KERNEL_OK")
</pallas_src>

<mosaic_0001>
module attributes {stable_mosaic.version = 11 : i64} {
  func.func @_logistic_kernel(%arg0: i32, %arg1: memref<3xf32, #tpu.memory_space<smem>>, %arg2: memref<1xf32, #tpu.memory_space<smem>>, %arg3: memref<3x128xf32, #tpu.memory_space<vmem>>, %arg4: memref<1x128xf32, #tpu.memory_space<vmem>>) attributes {dimension_semantics = [#tpu.dimension_semantics<parallel>], iteration_bounds = array<i64: 1>, scalar_prefetch = 0 : i64, scratch_operands = 0 : i64, tpu.core_type = #tpu.core_type<tc>, window_params = [{transform_indices = @transform_0, window_bounds = array<i64: 3>}, {transform_indices = @transform_1, window_bounds = array<i64: 1>}, {transform_indices = @transform_2, window_bounds = array<i64: 3, 128>}, {transform_indices = @transform_3, window_bounds = array<i64: 1, 128>}]} {
    %c0 = arith.constant 0 : index
    %0 = memref.load %arg1[%c0] : memref<3xf32, #tpu.memory_space<smem>>
    %c0_0 = arith.constant 0 : index
    %c0_1 = arith.constant 0 : index
    %1 = vector.load %arg3[%c0_0, %c0_1] : memref<3x128xf32, #tpu.memory_space<vmem>>, vector<1x128xf32>
    %2 = vector.broadcast %0 : f32 to vector<1x128xf32>
    %3 = arith.mulf %2, %1 : vector<1x128xf32>
    %c1 = arith.constant 1 : index
    %4 = memref.load %arg1[%c1] : memref<3xf32, #tpu.memory_space<smem>>
    %c1_2 = arith.constant 1 : index
    %c0_3 = arith.constant 0 : index
    %5 = vector.load %arg3[%c1_2, %c0_3] : memref<3x128xf32, #tpu.memory_space<vmem>>, vector<1x128xf32>
    %6 = vector.broadcast %4 : f32 to vector<1x128xf32>
    %7 = arith.mulf %6, %5 : vector<1x128xf32>
    %8 = arith.addf %3, %7 : vector<1x128xf32>
    %c2 = arith.constant 2 : index
    %9 = memref.load %arg1[%c2] : memref<3xf32, #tpu.memory_space<smem>>
    %c2_4 = arith.constant 2 : index
    %c0_5 = arith.constant 0 : index
    %10 = vector.load %arg3[%c2_4, %c0_5] : memref<3x128xf32, #tpu.memory_space<vmem>>, vector<1x128xf32>
    %11 = vector.broadcast %9 : f32 to vector<1x128xf32>
    %12 = arith.mulf %11, %10 : vector<1x128xf32>
    %13 = arith.addf %8, %12 : vector<1x128xf32>
    %c0_6 = arith.constant 0 : index
    %14 = memref.load %arg2[%c0_6] : memref<1xf32, #tpu.memory_space<smem>>
    %15 = vector.broadcast %14 : f32 to vector<1x128xf32>
    %16 = arith.addf %13, %15 : vector<1x128xf32>
    %cst = arith.constant 0.000000e+00 : f32
    %17 = vector.broadcast %cst : f32 to vector<1x128xf32>
    %18 = arith.subf %17, %16 : vector<1x128xf32>
    %19 = math.exp %18 : vector<1x128xf32>
    %cst_7 = arith.constant 1.000000e+00 : f32
    %20 = vector.broadcast %cst_7 : f32 to vector<1x128xf32>
    %21 = arith.addf %20, %19 : vector<1x128xf32>
    %cst_8 = arith.constant 1.000000e+00 : f32
    %22 = vector.broadcast %cst_8 : f32 to vector<1x128xf32>
    %23 = arith.divf %22, %21 : vector<1x128xf32>
    %c0_9 = arith.constant 0 : index
    %c0_10 = arith.constant 0 : index
    %24 = vector.load %arg4[%c0_9, %c0_10] : memref<1x128xf32, #tpu.memory_space<vmem>>, vector<1x128xf32>
    tpu.vector_store %arg4[%c0_9, %c0_10], %23 {strides = array<i32>} : memref<1x128xf32, #tpu.memory_space<vmem>>, vector<1x128xf32>,
    return
  }
  func.func @transform_0(%arg0: i32) -> i32 {
    %c0_i32 = arith.constant 0 : i32
    %c0_i32_0 = arith.constant 0 : i32
    return %c0_i32 : i32
  }
  func.func @transform_1(%arg0: i32) -> i32 {
    %c0_i32 = arith.constant 0 : i32
    %c0_i32_0 = arith.constant 0 : i32
    return %c0_i32 : i32
  }
  func.func @transform_2(%arg0: i32) -> (i32, i32) {
    %c0_i32 = arith.constant 0 : i32
    %c0_i32_0 = arith.constant 0 : i32
    return %c0_i32, %arg0 : i32, i32
  }
  func.func @transform_3(%arg0: i32) -> (i32, i32) {
    %c0_i32 = arith.constant 0 : i32
    %c0_i32_0 = arith.constant 0 : i32
    return %c0_i32, %arg0 : i32, i32
  }
}

</mosaic_0001>

<llo_original>
// kernel: tpu_custom_call.1
$region0: #{tpu_custom_call.1}
  #allocation0 [shape = 'u32[]', space=smem, size = 0x4, offset = 0x4, fixed_abs, tag = 'smem constant byte address 0x4 - core index']
  #allocation1 [shape = 'u32[72,128]{1,0:T(1,128)}', space=vmem, size = 0x9000, scoped, tag = 'internal scratch']
  #allocation2 [shape = 'f32[1]{0:T(128)S(6)}', space=smem, size = 0x200, scoped, tag = 'scoped memory for tpu_custom_call.1']
  %s0 = inlined_call_operand.vmem [shape: f32[3], index: 0, kind: input, shape index: {}]
  %s1 = inlined_call_operand.<no memory space> [shape: f32[1], index: 1, kind: input, shape index: {}]
  %s2 = inlined_call_operand.hbm [shape: f32[3,128], index: 2, kind: input, shape index: {}]
  %s3 = inlined_call_operand.hbm [shape: f32[1,128], index: 3, kind: output, shape index: {}]
  %s4 = sld [smem:[#allocation0]]
  $region30: #{tpu_custom_call.1} parent=0
    _
  %s6 = ssub.s32 1, %s4
  %s7 = scalar_select 0, %s6, %s4
  %8 = sst [smem:[#allocation2]] %s1
  $region1: #{tpu_custom_call.1} parent=0
    #allocation3 [shape = 'u8[512]{0}', space=smem, size = 0x200, scoped, tag = 'input window, operand 0, single buffered']
    #allocation4 [shape = 's32[1]{0}', space=sflag, size = 0x4, scoped, tag = 'scoped memory for tpu_custom_call.1']
    #allocation5 [shape = 's32[1]{0}', space=sflag, size = 0x4, scoped, tag = 'scoped memory for tpu_custom_call.1']
    #allocation6 [shape = 's32[1]{0}', space=sflag, size = 0x4, scoped, tag = 'scoped memory for tpu_custom_call.1']
    #allocation7 [shape = 'u8[2048]{0}', space=vmem, size = 0x800, scoped, tag = 'input window, operand 2, single buffered']
    #allocation8 [shape = 'u8[512]{0}', space=vmem, size = 0x400, scoped, tag = 'output window, operand 0, single buffered']
    %9 = vsyncpa [#allocation6], 0
    %10 = vsyncpa [#allocation4], 0
    %11 = vsyncpa [#allocation5], 0
    // Predicated region
    $region2: #{tpu_custom_call.1} parent=1 // pred_check
      _
    $region3: #{tpu_custom_call.1} parent=1 // pred_check_branch
      %13 = sbr.rel (0) target = $region5
    $region4: #{tpu_custom_call.1} parent=1 // pred_region
      %15 = vsyncadd [#allocation6], 0
      %s17 = sshll.u32 %s0, 4
      %s18 = int_to_ptr.vmem [resolvable:$true] %s17
      %20 = dma.vmem_to_smem %s18, 16, [#allocation3], [#allocation6]
    $region5: #{tpu_custom_call.1} parent=1 // pred_fallthru
      _
    // Predicated region
    $region6: #{tpu_custom_call.1} parent=1 // pred_check
      _
    $region7: #{tpu_custom_call.1} parent=1 // pred_check_branch
      %22 = sbr.rel (0) target = $region9
    $region8: #{tpu_custom_call.1} parent=1 // pred_region
      _
    $region9: #{tpu_custom_call.1} parent=1 // pred_fallthru
      _
    // Predicated region
    $region10: #{tpu_custom_call.1} parent=1 // pred_check
      _
    $region11: #{tpu_custom_call.1} parent=1 // pred_check_branch
      %24 = sbr.rel (0) target = $region13
    $region12: #{tpu_custom_call.1} parent=1 // pred_region
      %26 = vsyncadd [#allocation4], 0
      %s28 = sshll.u32 %s2, 4
      %s29 = int_to_ptr.hbm [resolvable:$true] %s28
      %s30 = sshll.u32 [#allocation7], 4
      %s31 = int_to_ptr.vmem [resolvable:$true] %s30
      %33 = dma.hbm_to_vmem [thread:$0]  %s29, 64, %s31, [#allocation4]
    $region13: #{tpu_custom_call.1} parent=1 // pred_fallthru
      _
    // Predicated region
    $region14: #{tpu_custom_call.1} parent=1 // pred_check
      _
    $region15: #{tpu_custom_call.1} parent=1 // pred_check_branch
      %35 = sbr.rel (0) target = $region17
    $region16: #{tpu_custom_call.1} parent=1 // pred_region
      %37 = dma.done [#allocation6], 16
    $region17: #{tpu_custom_call.1} parent=1 // pred_fallthru
      _
    // Predicated region
    $region18: #{tpu_custom_call.1} parent=1 // pred_check
      _
    $region19: #{tpu_custom_call.1} parent=1 // pred_check_branch
      %39 = sbr.rel (0) target = $region21
    $region20: #{tpu_custom_call.1} parent=1 // pred_region
      %41 = dma.done [#allocation4], 64
    $region21: #{tpu_custom_call.1} parent=1 // pred_fallthru
      _
    %42 = sfence
    %s43 = sld [smem:[#allocation3]]
    %v44 = vld [vmem:[#allocation7] sm:$0x1]
    %v45 = vstv %s43
    %v46 = vmul.f32 %v45, %v44
    %s47 = sld [smem:[#allocation3 + $0x1]]
    %v48 = vld [vmem:[#allocation7 + $0x1] sm:$0x1]
    %v49 = vstv %s47
    %v50 = vmul.f32 %v49, %v48
    %v51 = vadd.f32 %v46, %v50
    %s52 = sld [smem:[#allocation3 + $0x2]]
    %v53 = vld [vmem:[#allocation7 + $0x2] sm:$0x1]
    %v54 = vstv %s52
    %v55 = vmul.f32 %v54, %v53
    %v56 = vadd.f32 %v51, %v55
    %s57 = sld [smem:[#allocation2]]
    %v58 = vstv %s57
    %v59 = vadd.f32 %v56, %v58
    %v60 = vsub.f32 0.0, %v59
    %v61 = vmul.f32 %v60, 1.442695
    %v62 = vpow.pop %v61
    %v63 = vadd.f32 %v62, 1.0
    %v64 = vrcp.pop %v63
    %v65 = vmul.f32 %v63, %v64
    %v66 = vsub.f32 1.0, %v65
    %v67 = vmul.f32 %v64, %v66
    %v68 = vadd.f32 %v64, %v67
    %vm69 = vweird.f32 %v63
    %vm70 = vweird.f32 %v64
    %vm71 = vmor %vm69, %vm70
    %v72 = vsel %vm71, %v64, %v68
    %v73 = vand.u32 2147483647, %v63
    %vm74 = vcmp.eq.f32.partialorder %v73, 8.507059e+37
    %v75 = vand.u32 %v63, 2147483648
    %v76 = vor.u32 1.1754944e-38, %v75
    %v77 = vsel %vm74, %v76, %v72
    %v78 = vmul.f32 1.0, %v77
    %79 = vst [vmem:[#allocation8] sm:$0x1] %v78
    // Predicated region
    $region22: #{tpu_custom_call.1} parent=1 // pred_check
      _
    $region23: #{tpu_custom_call.1} parent=1 // pred_check_branch
      %81 = sbr.rel (0) target = $region25
    $region24: #{tpu_custom_call.1} parent=1 // pred_region
      %83 = vsyncadd [#allocation5], 0
      %s85 = sshll.u32 [#allocation8], 4
      %s86 = int_to_ptr.vmem [resolvable:$true] %s85
      %s87 = sshll.u32 %s3, 4
      %s88 = int_to_ptr.hbm [resolvable:$true] %s87
      %90 = dma.vmem_to_hbm [thread:$0]  %s86, 16, %s88, [#allocation5]
    $region25: #{tpu_custom_call.1} parent=1 // pred_fallthru
      _
    // Predicated region
    $region26: #{tpu_custom_call.1} parent=1 // pred_check
      _
    $region27: #{tpu_custom_call.1} parent=1 // pred_check_branch
      %92 = sbr.rel (0) target = $region29
    $region28: #{tpu_custom_call.1} parent=1 // pred_region
      %94 = dma.done [#allocation5], 16
    $region29: #{tpu_custom_call.1} parent=1 // pred_fallthru
      _
    %95 = vsyncpa [#allocation4], 1
    %96 = vsyncpa [#allocation5], 1
    %97 = vsyncpa [#allocation6], 1

</llo_original>
